<compile_context>
chip_gen: v5e
topology: v5e:2x2
jax: 0.10.0
libtpu: 0.0.40
codegen_flags: <defaults>
</compile_context>

<pallas_src>
import functools

import numpy as np
import jax
import jax.numpy as jnp
from jax.experimental import pallas as pl
from jax.experimental.pallas import tpu as pltpu

_NEG = -1e30  # "log zero" (finite, avoids inf-inf NaNs in the log-space DP)


def _round_up(x, m):
    return ((int(x) + m - 1) // m) * m


# ---------------------------------------------------------------------------
# One-off probe of pltpu.roll's shift convention (element s -> s+shift, like
# jnp.roll, vs. the opposite), so the DP shift direction is robust.
# ---------------------------------------------------------------------------
_ROLL_PROBE = {"jnp_convention": None}


def _roll_is_jnp_convention():
    if _ROLL_PROBE["jnp_convention"] is None:
        def _probe(x_ref, o_ref):
            o_ref[...] = pltpu.roll(x_ref[...], 1, 1)

        x = jax.lax.broadcasted_iota(jnp.float32, (8, 128), 1)
        y = pl.pallas_call(
            _probe, out_shape=jax.ShapeDtypeStruct((8, 128), jnp.float32))(x)
        y = np.asarray(jax.block_until_ready(y))
        _ROLL_PROBE["jnp_convention"] = bool(float(y[0, 1]) == 0.0)
    return _ROLL_PROBE["jnp_convention"]


# ---------------------------------------------------------------------------
# Generation-aware block sizing / VMEM limits.
# ---------------------------------------------------------------------------
def _tpu_config():
    kind = ""
    try:
        kind = jax.devices()[0].device_kind.lower()
    except Exception:
        pass
    if "v7" in kind or "tpu7" in kind or "tpu 7" in kind:
        # 64 MiB physical VMEM: leave headroom for compiler scratch.
        return {"tt_cap": 256, "vmem_limit": 52 << 20, "budget": 14 << 20}
    if "v6" in kind:
        # 128 MiB VMEM, 256-wide MXU: big time blocks pay off.
        return {"tt_cap": 256, "vmem_limit": 100 << 20, "budget": 24 << 20}
    if "v5" in kind:
        # 128 MiB VMEM, 128-wide MXU: TT>128 buys nothing on the MXU.
        return {"tt_cap": 128, "vmem_limit": 100 << 20, "budget": 24 << 20}
    # Unknown / conservative (assume small VMEM).
    return {"tt_cap": 128, "vmem_limit": 48 << 20, "budget": 12 << 20}


def _choose_tt(T, BB, S, Cp, budget, tt_cap):
    # Per-time-step VMEM bytes: stage + lpe f32 rows of (BB,S) plus the
    # double-buffered (BB, tt, Cp) f32 acts slab.
    per_t = 2 * BB * S * 4 + 2 * BB * Cp * 4
    tt = (budget // max(per_t, 1)) // 8 * 8
    tt = min(tt, tt_cap, _round_up(max(T, 1), 8))
    return max(8, int(tt))


# ---------------------------------------------------------------------------
# Pallas kernel: one grid step == TT CTC time steps for BB batch rows.
#   maxlen_ref : (n_bc,)     SMEM (scalar prefetch): per-chunk max(act_len)
#   acts_ref   : (BB, TT, Cp) raw logits for this block (f32)
#   ext_ref    : (BB, S)     int32 blank-extended labels (blank padded)
#   alens_ref  : (BB, 1)     int32 act_lens (resident; in-kernel time mask)
#   valid_ref  : (BB, S)     0 where s < 2*L_b+1 else NEG
#   skip_ref   : (BB, S)     0 where the s-2 "skip" transition is allowed else NEG
#   final_ref  : (BB, S)     0 at the final two alpha positions else NEG
#   cost_ref   : (BB, 1)     output: per-example -log p(labels | acts)
#   alpha_ref  : (BB, S)     VMEM scratch: log-space forward variables
#   stage_ref  : (BB, TT, S) VMEM scratch: dense per-row ext-label log-probs
#   lpe_ref    : (TT, BB, S) VMEM scratch: time-major copy consumed by the DP
#   oh_ref     : (BB, Cp, S) VMEM scratch: bf16 one-hot, built once per chunk
# ---------------------------------------------------------------------------
def _ctc_kernel(maxlen_ref, acts_ref, ext_ref, alens_ref, valid_ref, skip_ref,
                final_ref, cost_ref, alpha_ref, stage_ref, lpe_ref, oh_ref,
                *, shift1, shift2):
    neg = jnp.float32(_NEG)
    bc = pl.program_id(0)
    tb = pl.program_id(1)
    n_tb = pl.num_programs(1)
    BB, S = alpha_ref.shape
    TT = lpe_ref.shape[0]
    Cp = oh_ref.shape[1]
    t_base = tb * TT

    # Skip time blocks that lie entirely past every sequence in this chunk.
    @pl.when(t_base < maxlen_ref[bc])
    def _compute():
        # --- Stage 0: build the bf16 one-hot gather table once per chunk ----
        @pl.when(tb == 0)
        def _build_onehot():
            cls = jax.lax.broadcasted_iota(jnp.int32, (Cp, S), 0)

            def build(b, carry):
                lab = ext_ref[pl.ds(b, 1), :]                   # (1, S) int32
                oh_ref[b] = (cls == lab).astype(jnp.bfloat16)   # (Cp, S)
                return carry

            jax.lax.fori_loop(0, BB, build, 0, unroll=min(4, BB))

        # --- Stage 1: MXU one-hot gather + log-softmax + folded valid mask --
        # lpe[t, b, s] = log softmax(acts[b, t, :])[ext[b, s]] + valid[b, s]
        # The f32 logits are split hi/lo into bf16 so two DEFAULT-precision
        # MXU matmuls give an (effectively) exact gather of the f32 values.
        def s1(b, carry):
            xb = acts_ref[b]                                    # (TT, Cp) f32
            mb = jnp.max(xb, axis=-1, keepdims=True)
            logz = mb + jnp.log(jnp.sum(jnp.exp(xb - mb), axis=-1,
                                        keepdims=True))
            hi = xb.astype(jnp.bfloat16)
            lo = (xb - hi.astype(jnp.float32)).astype(jnp.bfloat16)
            oh = oh_ref[b]                                      # (Cp, S) bf16
            raw = (jnp.dot(hi, oh, preferred_element_type=jnp.float32)
                   + jnp.dot(lo, oh, preferred_element_type=jnp.float32))
            stage_ref[b] = raw - logz + valid_ref[pl.ds(b, 1), :]
            return carry

        jax.lax.fori_loop(0, BB, s1, 0, unroll=min(4, BB))
        # One bulk relayout instead of TT*(S/128) masked sublane stores / row.
        lpe_ref[...] = pltpu.einshape("bts->tbs", stage_ref[...])

        # --- Stage 2: log-space CTC alpha recursion over the TT steps -------
        lane = jax.lax.broadcasted_iota(jnp.int32, (BB, S), 1)
        edge1 = jnp.where(lane < 1, neg, jnp.float32(0.0))       # kill wrapped s-1
        skip2 = skip_ref[...] + jnp.where(lane < 2, neg, jnp.float32(0.0))
        alens = alens_ref[...]                                   # (BB, 1) int32

        @pl.when(tb == 0)
        def _init_alpha():                                       # peeled t == 0
            alpha_ref[...] = jnp.where(lane < 2, lpe_ref[0], neg)

        def step(i, carry):
            gt = t_base + i                                      # global time
            lpe = lpe_ref[i]                                     # (BB, S)
            ap = alpha_ref[...]
            a1 = pltpu.roll(ap, shift1, 1) + edge1               # alpha[t-1, s-1]
            a2 = pltpu.roll(ap, shift2, 1) + skip2               # alpha[t-1, s-2]
            mm = jnp.maximum(jnp.maximum(ap, a1), a2)
            lse3 = mm + jnp.log(jnp.exp(ap - mm) + jnp.exp(a1 - mm)
                                + jnp.exp(a2 - mm))
            anew = jnp.maximum(lse3 + lpe, neg)                  # clamp dead lanes
            live = jnp.logical_and(gt >= 1, gt < alens)          # skip t==0, freeze t>=len
            alpha_ref[...] = jnp.where(live, anew, ap)
            return carry

        jax.lax.fori_loop(0, TT, step, 0, unroll=min(8, TT))

    # --- Stage 3: -log p = -logsumexp over the two final extended states ----
    @pl.when(tb == n_tb - 1)
    def _finalize():
        a = alpha_ref[...] + final_ref[...]
        mm = jnp.max(a, axis=-1, keepdims=True)
        cost_ref[...] = -(mm + jnp.log(jnp.sum(jnp.exp(a - mm), axis=-1,
                                               keepdims=True)))


def _ctc_pallas(acts_btc, ext, alens, valid, skip, final, chunk_maxlen,
                n_bc, tt, vmem_limit):
    Bp, Tp, Cp = acts_btc.shape
    S = valid.shape[1]
    BB = Bp // n_bc
    n_tb = Tp // tt

    if _roll_is_jnp_convention():
        shift1, shift2 = 1, 2              # roll(+k): element s -> s+k
    else:
        shift1, shift2 = S - 1, S - 2      # opposite convention, same rotation

    kernel = functools.partial(_ctc_kernel, shift1=shift1, shift2=shift2)

    grid_spec = pltpu.PrefetchScalarGridSpec(
        num_scalar_prefetch=1,
        grid=(n_bc, n_tb),
        in_specs=[
            # acts (Bp, Tp, Cp): one (BB, TT, Cp) slab per grid step
            pl.BlockSpec((BB, tt, Cp), lambda bc, t, ml: (bc, t, 0)),
            # extended labels (Bp, S) int32: resident per batch chunk
            pl.BlockSpec((BB, S), lambda bc, t, ml: (bc, 0)),
            # act_lens (Bp, 1) int32: resident
            pl.BlockSpec((BB, 1), lambda bc, t, ml: (bc, 0)),
            # valid / skip / final masks (Bp, S): resident per batch chunk
            pl.BlockSpec((BB, S), lambda bc, t, ml: (bc, 0)),
            pl.BlockSpec((BB, S), lambda bc, t, ml: (bc, 0)),
            pl.BlockSpec((BB, S), lambda bc, t, ml: (bc, 0)),
        ],
        out_specs=pl.BlockSpec((BB, 1), lambda bc, t, ml: (bc, 0)),
        scratch_shapes=[
            pltpu.VMEM((BB, S), jnp.float32),        # alpha DP state
            pltpu.VMEM((BB, tt, S), jnp.float32),    # dense Stage-1 staging
            pltpu.VMEM((tt, BB, S), jnp.float32),    # time-major log-probs
            pltpu.VMEM((BB, Cp, S), jnp.bfloat16),   # one-hot, built per chunk
        ],
    )

    return pl.pallas_call(
        kernel,
        out_shape=jax.ShapeDtypeStruct((Bp, 1), jnp.float32),
        grid_spec=grid_spec,
        compiler_params=pltpu.CompilerParams(
            dimension_semantics=("parallel", "arbitrary"),
            vmem_limit_bytes=int(vmem_limit)),
    )(chunk_maxlen, acts_btc, ext, alens, valid, skip, final)


# ---------------------------------------------------------------------------
# Host-side glue: small blank-extended label tables (labels / lens are concrete
# host integers, exactly as in warp-ctc's C interface).  S is padded to a
# multiple of 128 (lane-dense), the batch to a multiple of BB.
# ---------------------------------------------------------------------------
def _build_tables(labels, act_lens, label_lens, B, Bp, S, blank):
    ext = np.full((Bp, S), blank, np.int32)
    valid = np.full((Bp, S), _NEG, np.float32)
    skip = np.full((Bp, S), _NEG, np.float32)
    final = np.full((Bp, S), _NEG, np.float32)
    alens = np.ones((Bp, 1), np.int32)
    off = 0
    for b in range(B):
        L = int(label_lens[b])
        lab = labels[off:off + L]
        off += L
        e = [blank]
        for l in lab:
            e += [int(l), blank]
        Sb = 2 * L + 1
        ext[b, :Sb] = e
        valid[b, :Sb] = 0.0
        for s in range(2, Sb):
            if e[s] != blank and e[s] != e[s - 2]:
                skip[b, s] = 0.0
        final[b, Sb - 1] = 0.0
        if Sb >= 2:
            final[b, Sb - 2] = 0.0
        alens[b, 0] = max(1, int(act_lens[b]))
    # padded batch rows: 1 frame, empty label -> finite cost, discarded later
    for b in range(B, Bp):
        valid[b, 0] = 0.0
        final[b, 0] = 0.0
    return ext, valid, skip, final, alens


class CTCLoss:
    """JAX/Pallas equivalent of warpctc_pytorch.CTCLoss (forward only)."""

    def __init__(self, blank=0, size_average=False, length_average=False):
        self.blank = blank
        self.size_average = size_average
        self.length_average = length_average

    def __call__(self, acts, labels, act_lens, label_lens):
        # acts: (T, B, C) float; labels: 1-D concatenated targets;
        # act_lens, label_lens: (B,) ints.
        acts = jnp.asarray(acts, jnp.float32)
        T, B, C = acts.shape
        labels_np = np.asarray(labels).astype(np.int64).reshape(-1)
        act_lens_np = np.asarray(act_lens).astype(np.int64).reshape(-1)
        label_lens_np = np.asarray(label_lens).astype(np.int64).reshape(-1)

        cfg = _tpu_config()
        Lmax = int(label_lens_np.max()) if B > 0 else 0
        S = _round_up(max(2 * Lmax + 1, 3), 128)
        # Batch rows per grid step: >= ~4 f32 vregs of (BB, S) DP state so the
        # latency-bound alpha chain has row-level ILP to hide EUP/XLU latency.
        BB = max(8, min(64, _round_up(max(1, -(-4096 // S)), 8)))
        Bp = _round_up(max(B, 1), BB)
        n_bc = Bp // BB

        ext, valid, skip, final, alens = _build_tables(
            labels_np, act_lens_np, label_lens_np, B, Bp, S, self.blank)

        Cp = _round_up(C, 16)
        tt = _choose_tt(T, BB, S, Cp, cfg["budget"], cfg["tt_cap"])
        Tp = _round_up(T, tt)

        # Device-side prep (plain XLA, outside the kernel): (B, T, C) layout,
        # class dim padded with very negative logits (softmax-neutral), batch
        # and time zero-padded.  No O(B*S*C) host one-hot / H2D transfer.
        x = jnp.transpose(acts, (1, 0, 2))
        if Cp > C:
            x = jnp.pad(x, ((0, 0), (0, 0), (0, Cp - C)),
                        constant_values=-1e9)
        x = jnp.pad(x, ((0, Bp - B), (0, Tp - T), (0, 0)))

        # Per-batch-chunk max act_len (scalar prefetch): lets the kernel skip
        # whole dead time blocks.
        chunk_maxlen = jnp.asarray(
            alens.reshape(n_bc, BB).max(axis=1).astype(np.int32))

        costs = _ctc_pallas(x, jnp.asarray(ext), jnp.asarray(alens),
                            jnp.asarray(valid), jnp.asarray(skip),
                            jnp.asarray(final), chunk_maxlen,
                            n_bc, tt, cfg["vmem_limit"])
        costs = costs[:B, 0]                                           # (B,)
        total = jnp.sum(costs).reshape(1).astype(jnp.float32)          # (1,)
        if self.length_average:
            total = total / float(np.sum(act_lens_np))
        elif self.size_average:
            total = total / float(B)
        return total


# ---------------------------------------------------------------------------
# Pure-numpy reference (standard CTC forward algorithm, float64) for checking.
# ---------------------------------------------------------------------------
def _ctc_reference(acts, labels, act_lens, label_lens, blank=0):
    acts = np.asarray(acts, np.float64)
    T, B, C = acts.shape
    total = 0.0
    off = 0
    for b in range(B):
        L = int(label_lens[b])
        Tb = int(act_lens[b])
        lab = [int(x) for x in labels[off:off + L]]
        off += L
        a = acts[:Tb, b]
        a = a - a.max(-1, keepdims=True)
        lp = a - np.log(np.exp(a).sum(-1, keepdims=True))
        ext = [blank]
        for l in lab:
            ext += [l, blank]
        S = 2 * L + 1
        alpha = np.full(S, -np.inf)
        alpha[0] = lp[0, blank]
        if S > 1:
            alpha[1] = lp[0, ext[1]]
        for t in range(1, Tb):
            new = np.full(S, -np.inf)
            for s in range(S):
                c = alpha[s]
                if s >= 1:
                    c = np.logaddexp(c, alpha[s - 1])
                if s >= 2 and ext[s] != blank and ext[s] != ext[s - 2]:
                    c = np.logaddexp(c, alpha[s - 2])
                new[s] = c + lp[t, ext[s]]
            alpha = new
        ll = alpha[S - 1]
        if S >= 2:
            ll = np.logaddexp(ll, alpha[S - 2])
        total += -ll
    return total


if __name__ == "__main__":
    # Small deterministic example: T=12 frames, batch B=3 (tests batch padding
    # to BB and S padding to 128), C=6 classes (0 = blank).
    T, B, C = 12, 3, 6
    key = jax.random.PRNGKey(0)
    acts = jax.random.normal(key, (T, B, C), dtype=jnp.float32)

    labels = np.array([1, 2, 3, 2, 4, 1, 3, 5, 2], dtype=np.int32)  # concat targets
    label_lens = np.array([3, 2, 4], dtype=np.int32)
    act_lens = np.array([12, 9, 10], dtype=np.int32)

    ctc = CTCLoss(blank=0, size_average=False, length_average=False)
    out = ctc(acts, labels, act_lens, label_lens)
    out = jax.block_until_ready(out)

    ref = _ctc_reference(np.asarray(acts), labels, act_lens, label_lens, blank=0)
    assert out.shape == (1,), out.shape
    assert np.allclose(np.asarray(out)[0], ref, rtol=1e-3, atol=1e-3), (out, ref)
    print("KERNEL_OK")
</pallas_src>

<mosaic_0001>
module attributes {stable_mosaic.version = 11 : i64} {
  func.func @_probe(%arg0: memref<8x128xf32, #tpu.memory_space<vmem>>, %arg1: memref<8x128xf32, #tpu.memory_space<vmem>>) attributes {dimension_semantics = [], scalar_prefetch = 0 : i64, scratch_operands = 0 : i64, tpu.core_type = #tpu.core_type<tc>} {
    %c0 = arith.constant 0 : index
    %c0_0 = arith.constant 0 : index
    %0 = vector.load %arg0[%c0, %c0_0] : memref<8x128xf32, #tpu.memory_space<vmem>>, vector<8x128xf32>
    %c1_i32 = arith.constant 1 : i32
    %1 = tpu.dynamic_rotate %0 by %c1_i32 dim 1 : vector<8x128xf32>, i32 -> vector<8x128xf32>
    %c0_1 = arith.constant 0 : index
    %c0_2 = arith.constant 0 : index
    %2 = vector.load %arg1[%c0_1, %c0_2] : memref<8x128xf32, #tpu.memory_space<vmem>>, vector<8x128xf32>
    tpu.vector_store %arg1[%c0_1, %c0_2], %1 {strides = array<i32>} : memref<8x128xf32, #tpu.memory_space<vmem>>, vector<8x128xf32>,
    return
  }
}

</mosaic_0001>

<llo_original>
// kernel: tpu_custom_call.1
$region0: #{tpu_custom_call.1}
  #allocation0 [shape = 'u32[]', space=smem, size = 0x4, offset = 0x4, fixed_abs, tag = 'smem constant byte address 0x4 - core index']
  #allocation1 [shape = 'u32[72,128]{1,0:T(1,128)}', space=vmem, size = 0x9000, scoped, tag = 'internal scratch']
  %s0 = inlined_call_operand.hbm [shape: f32[8,128], index: 0, kind: input, shape index: {}]
  %s1 = inlined_call_operand.hbm [shape: f32[8,128], index: 1, kind: output, shape index: {}]
  %s2 = sld [smem:[#allocation0]]
  $region18: #{tpu_custom_call.1} parent=0
    _
  %s4 = ssub.s32 1, %s2
  %s5 = scalar_select 0, %s4, %s2
  $region1: #{tpu_custom_call.1} parent=0
    #allocation2 [shape = 'u8[4096]{0}', space=vmem, size = 0x1000, scoped, tag = 'input window, operand 0, single buffered']
    #allocation3 [shape = 's32[1]{0}', space=sflag, size = 0x4, scoped, tag = 'scoped memory for tpu_custom_call.1']
    #allocation4 [shape = 's32[1]{0}', space=sflag, size = 0x4, scoped, tag = 'scoped memory for tpu_custom_call.1']
    #allocation5 [shape = 'u8[4096]{0}', space=vmem, size = 0x1000, scoped, tag = 'output window, operand 0, single buffered']
    %6 = vsyncpa [#allocation3], 0
    %7 = vsyncpa [#allocation4], 0
    // Predicated region
    $region2: #{tpu_custom_call.1} parent=1 // pred_check
      _
    $region3: #{tpu_custom_call.1} parent=1 // pred_check_branch
      %9 = sbr.rel (0) target = $region5
    $region4: #{tpu_custom_call.1} parent=1 // pred_region
      %11 = vsyncadd [#allocation3], 0
      %s13 = sshll.u32 %s0, 4
      %s14 = int_to_ptr.hbm [resolvable:$true] %s13
      %s15 = sshll.u32 [#allocation2], 4
      %s16 = int_to_ptr.vmem [resolvable:$true] %s15
      %18 = dma.hbm_to_vmem [thread:$0]  %s14, 128, %s16, [#allocation3]
    $region5: #{tpu_custom_call.1} parent=1 // pred_fallthru
      _
    // Predicated region
    $region6: #{tpu_custom_call.1} parent=1 // pred_check
      _
    $region7: #{tpu_custom_call.1} parent=1 // pred_check_branch
      %20 = sbr.rel (0) target = $region9
    $region8: #{tpu_custom_call.1} parent=1 // pred_region
      %22 = dma.done [#allocation3], 128
    $region9: #{tpu_custom_call.1} parent=1 // pred_fallthru
      _
    %v23 = vld [vmem:[#allocation2] sm:$0xff]
    %24 = vrot.lane.b32.xlu0 %v23, 1
    %v25 = vpop.permute.xlu0 %24
    %26 = vst [vmem:[#allocation5] sm:$0xff] %v25
    // Predicated region
    $region10: #{tpu_custom_call.1} parent=1 // pred_check
      _
    $region11: #{tpu_custom_call.1} parent=1 // pred_check_branch
      %28 = sbr.rel (0) target = $region13
    $region12: #{tpu_custom_call.1} parent=1 // pred_region
      %30 = vsyncadd [#allocation4], 0
      %s32 = sshll.u32 [#allocation5], 4
      %s33 = int_to_ptr.vmem [resolvable:$true] %s32
      %s34 = sshll.u32 %s1, 4
      %s35 = int_to_ptr.hbm [resolvable:$true] %s34
      %37 = dma.vmem_to_hbm [thread:$0]  %s33, 128, %s35, [#allocation4]
    $region13: #{tpu_custom_call.1} parent=1 // pred_fallthru
      _
    // Predicated region
    $region14: #{tpu_custom_call.1} parent=1 // pred_check
      _
    $region15: #{tpu_custom_call.1} parent=1 // pred_check_branch
      %39 = sbr.rel (0) target = $region17
    $region16: #{tpu_custom_call.1} parent=1 // pred_region
      %41 = dma.done [#allocation4], 128
    $region17: #{tpu_custom_call.1} parent=1 // pred_fallthru
      _
    %42 = vsyncpa [#allocation3], 1
    %43 = vsyncpa [#allocation4], 1

</llo_original>
